<compile_context>
chip_gen: v5e
topology: v5e:2x2
jax: 0.10.0
libtpu: 0.0.40
codegen_flags: <defaults>
</compile_context>

<pallas_src>
import functools

import jax
import jax.numpy as jnp
from jax.experimental import pallas as pl
from jax.experimental.pallas import tpu as pltpu


def _patch_merge_kernel(xe_ref, xo_ref, gamma_ref, beta_ref, w_ref, b_ref, o_ref):
    """Fused 2x2-merge + LayerNorm(4C) + Linear(4C -> OUT) for one row tile.

    xe_ref:  (BH, W2, 2C)  even input rows  -> features [x0 | x2]
    xo_ref:  (BH, W2, 2C)  odd  input rows  -> features [x1 | x3]
    gamma_ref, beta_ref: (1, 4C)  LayerNorm params, pre-permuted to the
                                   in-kernel feature order [x0 | x2 | x1 | x3]
    w_ref:   (4C, OUT) bf16  Linear weight, rows permuted the same way
    b_ref:   (1, OUT)        Linear bias
    o_ref:   (BH, W2, OUT)   output tile
    """
    bh, w2, two_c = xe_ref.shape
    rows = bh * w2
    four_c = 2 * two_c

    # In-VMEM 2x2 merge: concat even/odd row slabs along the feature axis and
    # flatten (BH, W2) into the token-row axis. No HBM round trip.
    x = jnp.concatenate([xe_ref[...], xo_ref[...]], axis=-1)        # (BH, W2, 4C)
    x = x.reshape(rows, four_c).astype(jnp.float32)

    # LayerNorm over 4C (f32 stats, biased variance, eps=1e-5 like nn.LayerNorm).
    mean = jnp.mean(x, axis=-1, keepdims=True)
    centered = x - mean
    var = jnp.mean(centered * centered, axis=-1, keepdims=True)
    x_norm = centered * jax.lax.rsqrt(var + 1e-5)
    x_norm = (x_norm * gamma_ref[...].astype(jnp.float32)
              + beta_ref[...].astype(jnp.float32))

    # Linear reduction on the MXU: bf16 inputs, f32 accumulation.
    out = jnp.dot(x_norm.astype(w_ref.dtype), w_ref[...],
                  preferred_element_type=jnp.float32)
    out = out + b_ref[...].astype(jnp.float32)
    o_ref[...] = out.reshape(o_ref.shape).astype(o_ref.dtype)


@functools.partial(jax.jit, static_argnames=("input_resolution", "tile_rows"))
def patch_merging(x, gamma, beta, weight_t, bias, *, input_resolution,
                  tile_rows=512):
    """Pallas implementation of PatchMerging.forward.

    x:        (B, H*W, C)
    gamma:    (4C,)      LayerNorm weight
    beta:     (4C,)      LayerNorm bias
    weight_t: (4C, OUT)  Linear weight, transposed from PyTorch's (OUT, 4C)
    bias:     (OUT,)
    returns:  (B, (H//2)*(W//2), OUT)
    """
    h, w = input_resolution
    b, L, c = x.shape
    assert L == h * w and h % 2 == 0 and w % 2 == 0
    h2, w2 = h // 2, w // 2
    two_c, four_c = 2 * c, 4 * c
    out_ch = weight_t.shape[1]

    # Free reshape (pure re-view of the contiguous token tensor):
    #   (B, H*W, C) -> (B*H/2, 2, W/2, 2C)
    # element [r, s, j, :] = x[b, 2i+s, 2j:2j+2, :] with r = b*(H/2) + i, so the
    # last axis is [x(dx=0) | x(dx=1)] for input-row parity s (dy).
    xr = x.reshape(b * h2, 2, w2, two_c)

    # The kernel's virtual concat order over the 4C axis is [x0 | x2 | x1 | x3]
    # (even rows give x0,x2; odd rows give x1,x3). LN stats and the matmul
    # reduction are order-invariant given a consistent permutation, so permute
    # the tiny per-feature parameters once here instead of shuffling
    # activations inside the kernel.
    def _perm(p, axis=0):
        p0, p1, p2, p3 = jnp.split(p, 4, axis=axis)
        return jnp.concatenate([p0, p2, p1, p3], axis=axis)

    gamma_p = _perm(gamma).reshape(1, four_c)
    beta_p = _perm(beta).reshape(1, four_c)
    w_p = _perm(weight_t, axis=0).astype(jnp.bfloat16)   # bf16 feed for the MXU
    bias2 = bias.reshape(1, out_ch)

    # Row tiling: each grid step covers `bh` merged rows, i.e. bh*w2 output
    # tokens. Aim for >= tile_rows tokens per step (large tiles -> near HBM
    # roofline). Partial last block is handled by Pallas boundary padding.
    n_rb = b * h2
    bh = max(1, min(n_rb, pl.cdiv(tile_rows, w2)))
    grid = (pl.cdiv(n_rb, bh),)

    out = pl.pallas_call(
        _patch_merge_kernel,
        out_shape=jax.ShapeDtypeStruct((n_rb, w2, out_ch), x.dtype),
        grid_spec=pltpu.PrefetchScalarGridSpec(
            num_scalar_prefetch=0,
            grid=grid,
            in_specs=[
                # even input rows -> [x0 | x2]
                pl.BlockSpec((bh, None, w2, two_c), lambda i: (i, 0, 0, 0)),
                # odd input rows  -> [x1 | x3]
                pl.BlockSpec((bh, None, w2, two_c), lambda i: (i, 1, 0, 0)),
                # grid-invariant params (constant index_map; tiny blocks).
                # For very large Swin stages these could additionally be
                # single-buffered to save VMEM.
                pl.BlockSpec((1, four_c), lambda i: (0, 0)),
                pl.BlockSpec((1, four_c), lambda i: (0, 0)),
                pl.BlockSpec((four_c, out_ch), lambda i: (0, 0)),
                pl.BlockSpec((1, out_ch), lambda i: (0, 0)),
            ],
            out_specs=pl.BlockSpec((bh, w2, out_ch), lambda i: (i, 0, 0)),
        ),
        compiler_params=pltpu.CompilerParams(
            dimension_semantics=("parallel",),
            vmem_limit_bytes=64 * 1024 * 1024,
        ),
    )(xr, xr, gamma_p, beta_p, w_p, bias2)

    return out.reshape(b, h2 * w2, out_ch)


def _reference(x, gamma, beta, weight_t, bias, input_resolution):
    """Plain-JAX (f32) reference mirroring the PyTorch forward."""
    h, w = input_resolution
    b, _, c = x.shape
    xr = x.reshape(b, h, w, c)
    x0 = xr[:, 0::2, 0::2, :]
    x1 = xr[:, 1::2, 0::2, :]
    x2 = xr[:, 0::2, 1::2, :]
    x3 = xr[:, 1::2, 1::2, :]
    xm = jnp.concatenate([x0, x1, x2, x3], -1).reshape(b, -1, 4 * c)
    mean = jnp.mean(xm, axis=-1, keepdims=True)
    var = jnp.mean((xm - mean) ** 2, axis=-1, keepdims=True)
    xn = (xm - mean) / jnp.sqrt(var + 1e-5) * gamma + beta
    return xn @ weight_t + bias


if __name__ == "__main__":
    # Small shapes consistent with the module: B=2, H=W=16, C=4 -> 4C=16, OUT=2C=8
    B, H, W, C = 2, 16, 16, 4
    OUT = 2 * C
    key = jax.random.PRNGKey(0)
    kx, kg, kb, kw, kbi = jax.random.split(key, 5)

    x = jax.random.normal(kx, (B, H * W, C), dtype=jnp.float32)

    # Deterministic parameter init (LayerNorm: ~ones/zeros; Linear: small uniform)
    gamma = jnp.ones((4 * C,), jnp.float32) + 0.01 * jax.random.normal(kg, (4 * C,))
    beta = 0.01 * jax.random.normal(kb, (4 * C,), dtype=jnp.float32)
    bound = 1.0 / jnp.sqrt(4.0 * C)
    weight = jax.random.uniform(kw, (OUT, 4 * C), minval=-bound, maxval=bound,
                                dtype=jnp.float32)   # PyTorch layout (out, in)
    bias = jax.random.uniform(kbi, (OUT,), minval=-bound, maxval=bound,
                              dtype=jnp.float32)
    weight_t = weight.T  # (4C, OUT) for x @ W.T

    out = patch_merging(x, gamma, beta, weight_t, bias,
                        input_resolution=(H, W), tile_rows=512)
    out = jax.block_until_ready(out)

    ref = _reference(x, gamma, beta, weight_t, bias, (H, W))
    assert out.shape == (B, (H // 2) * (W // 2), OUT), out.shape
    # bf16 MXU inputs (f32 LN + accumulation) -> compare to f32 ref at ~1e-2.
    max_err = float(jnp.max(jnp.abs(out - ref)))
    assert max_err < 5e-2, max_err

    print("KERNEL_OK")
</pallas_src>

<mosaic_0001>
module attributes {stable_mosaic.version = 11 : i64} {
  func.func @_patch_merge_kernel(%arg0: i32, %arg1: memref<16x1x8x8xf32, #tpu.memory_space<vmem>>, %arg2: memref<16x1x8x8xf32, #tpu.memory_space<vmem>>, %arg3: memref<1x16xf32, #tpu.memory_space<vmem>>, %arg4: memref<1x16xf32, #tpu.memory_space<vmem>>, %arg5: memref<16x8xbf16, #tpu.memory_space<vmem>>, %arg6: memref<1x8xf32, #tpu.memory_space<vmem>>, %arg7: memref<16x8x8xf32, #tpu.memory_space<vmem>>) attributes {dimension_semantics = [#tpu.dimension_semantics<parallel>], iteration_bounds = array<i64: 1>, scalar_prefetch = 0 : i64, scratch_operands = 0 : i64, tpu.core_type = #tpu.core_type<tc>, window_params = [{transform_indices = @transform_0, window_bounds = array<i64: 16, 1, 8, 8>}, {transform_indices = @transform_1, window_bounds = array<i64: 16, 1, 8, 8>}, {pipeline_mode = #tpu.pipeline_mode<synchronous>, transform_indices = @transform_2, window_bounds = array<i64: 1, 16>}, {pipeline_mode = #tpu.pipeline_mode<synchronous>, transform_indices = @transform_3, window_bounds = array<i64: 1, 16>}, {pipeline_mode = #tpu.pipeline_mode<synchronous>, transform_indices = @transform_4, window_bounds = array<i64: 16, 8>}, {pipeline_mode = #tpu.pipeline_mode<synchronous>, transform_indices = @transform_5, window_bounds = array<i64: 1, 8>}, {transform_indices = @transform_6, window_bounds = array<i64: 16, 8, 8>}]} {
    %c0 = arith.constant 0 : index
    %c0_0 = arith.constant 0 : index
    %c0_1 = arith.constant 0 : index
    %c0_2 = arith.constant 0 : index
    %0 = vector.load %arg1[%c0, %c0_0, %c0_1, %c0_2] : memref<16x1x8x8xf32, #tpu.memory_space<vmem>>, vector<16x1x8x8xf32>
    %1 = vector.shape_cast %0 : vector<16x1x8x8xf32> to vector<16x8x8xf32>
    %c0_3 = arith.constant 0 : index
    %c0_4 = arith.constant 0 : index
    %c0_5 = arith.constant 0 : index
    %c0_6 = arith.constant 0 : index
    %2 = vector.load %arg2[%c0_3, %c0_4, %c0_5, %c0_6] : memref<16x1x8x8xf32, #tpu.memory_space<vmem>>, vector<16x1x8x8xf32>
    %3 = vector.shape_cast %2 : vector<16x1x8x8xf32> to vector<16x8x8xf32>
    %4 = tpu.concatenate %1, %3 in 2 : vector<16x8x8xf32>, vector<16x8x8xf32> -> vector<16x8x16xf32>
    %5 = vector.shape_cast %4 : vector<16x8x16xf32> to vector<128x16xf32>
    %cst = arith.constant dense<0.000000e+00> : vector<128xf32>
    %6 = vector.multi_reduction <add>, %5, %cst [1] : vector<128x16xf32> to vector<128xf32>
    %7 = vector.shape_cast %6 : vector<128xf32> to vector<128x1xf32>
    %cst_7 = arith.constant 1.600000e+01 : f32
    %8 = vector.broadcast %cst_7 : f32 to vector<128x1xf32>
    %9 = arith.divf %7, %8 : vector<128x1xf32>
    %10 = vector.broadcast %9 : vector<128x1xf32> to vector<128x16xf32>
    %11 = arith.subf %5, %10 : vector<128x16xf32>
    %12 = arith.mulf %11, %11 : vector<128x16xf32>
    %cst_8 = arith.constant dense<0.000000e+00> : vector<128xf32>
    %13 = vector.multi_reduction <add>, %12, %cst_8 [1] : vector<128x16xf32> to vector<128xf32>
    %14 = vector.shape_cast %13 : vector<128xf32> to vector<128x1xf32>
    %cst_9 = arith.constant 1.600000e+01 : f32
    %15 = vector.broadcast %cst_9 : f32 to vector<128x1xf32>
    %16 = arith.divf %14, %15 : vector<128x1xf32>
    %cst_10 = arith.constant 9.99999974E-6 : f32
    %17 = vector.broadcast %cst_10 : f32 to vector<128x1xf32>
    %18 = arith.addf %16, %17 : vector<128x1xf32>
    %19 = math.rsqrt %18 : vector<128x1xf32>
    %20 = vector.broadcast %19 : vector<128x1xf32> to vector<128x16xf32>
    %21 = arith.mulf %11, %20 : vector<128x16xf32>
    %c0_11 = arith.constant 0 : index
    %c0_12 = arith.constant 0 : index
    %22 = vector.load %arg3[%c0_11, %c0_12] : memref<1x16xf32, #tpu.memory_space<vmem>>, vector<1x16xf32>
    %23 = vector.broadcast %22 : vector<1x16xf32> to vector<128x16xf32>
    %24 = arith.mulf %21, %23 : vector<128x16xf32>
    %c0_13 = arith.constant 0 : index
    %c0_14 = arith.constant 0 : index
    %25 = vector.load %arg4[%c0_13, %c0_14] : memref<1x16xf32, #tpu.memory_space<vmem>>, vector<1x16xf32>
    %26 = vector.broadcast %25 : vector<1x16xf32> to vector<128x16xf32>
    %27 = arith.addf %24, %26 : vector<128x16xf32>
    %28 = arith.truncf %27 : vector<128x16xf32> to vector<128x16xbf16>
    %c0_15 = arith.constant 0 : index
    %c0_16 = arith.constant 0 : index
    %29 = vector.load %arg5[%c0_15, %c0_16] : memref<16x8xbf16, #tpu.memory_space<vmem>>, vector<16x8xbf16>
    %cst_17 = arith.constant dense<0.000000e+00> : vector<128x8xf32>
    %30 = tpu.matmul %28, %29, %cst_17 {dimension_numbers = #tpu.dot_dimension_numbers<[1], [0], [0], [1], [0, 0, 1, 1], [], []>} : vector<128x16xbf16>, vector<16x8xbf16>, vector<128x8xf32> -> vector<128x8xf32>
    %c0_18 = arith.constant 0 : index
    %c0_19 = arith.constant 0 : index
    %31 = vector.load %arg6[%c0_18, %c0_19] : memref<1x8xf32, #tpu.memory_space<vmem>>, vector<1x8xf32>
    %32 = vector.broadcast %31 : vector<1x8xf32> to vector<128x8xf32>
    %33 = arith.addf %30, %32 : vector<128x8xf32>
    %34 = vector.shape_cast %33 : vector<128x8xf32> to vector<16x8x8xf32>
    %c0_20 = arith.constant 0 : index
    %c0_21 = arith.constant 0 : index
    %c0_22 = arith.constant 0 : index
    %35 = vector.load %arg7[%c0_20, %c0_21, %c0_22] : memref<16x8x8xf32, #tpu.memory_space<vmem>>, vector<16x8x8xf32>
    tpu.vector_store %arg7[%c0_20, %c0_21, %c0_22], %34 {strides = array<i32>} : memref<16x8x8xf32, #tpu.memory_space<vmem>>, vector<16x8x8xf32>,
    return
  }
  func.func @transform_0(%arg0: i32) -> (i32, i32, i32, i32) {
    %c0_i32 = arith.constant 0 : i32
    %c0_i32_0 = arith.constant 0 : i32
    %c0_i32_1 = arith.constant 0 : i32
    %c0_i32_2 = arith.constant 0 : i32
    return %arg0, %c0_i32, %c0_i32_0, %c0_i32_1 : i32, i32, i32, i32
  }
  func.func @transform_1(%arg0: i32) -> (i32, i32, i32, i32) {
    %c1_i32 = arith.constant 1 : i32
    %c0_i32 = arith.constant 0 : i32
    %c0_i32_0 = arith.constant 0 : i32
    %c0_i32_1 = arith.constant 0 : i32
    return %arg0, %c1_i32, %c0_i32, %c0_i32_0 : i32, i32, i32, i32
  }
  func.func @transform_2(%arg0: i32) -> (i32, i32) {
    %c0_i32 = arith.constant 0 : i32
    %c0_i32_0 = arith.constant 0 : i32
    %c0_i32_1 = arith.constant 0 : i32
    return %c0_i32, %c0_i32_0 : i32, i32
  }
  func.func @transform_3(%arg0: i32) -> (i32, i32) {
    %c0_i32 = arith.constant 0 : i32
    %c0_i32_0 = arith.constant 0 : i32
    %c0_i32_1 = arith.constant 0 : i32
    return %c0_i32, %c0_i32_0 : i32, i32
  }
  func.func @transform_4(%arg0: i32) -> (i32, i32) {
    %c0_i32 = arith.constant 0 : i32
    %c0_i32_0 = arith.constant 0 : i32
    %c0_i32_1 = arith.constant 0 : i32
    return %c0_i32, %c0_i32_0 : i32, i32
  }
  func.func @transform_5(%arg0: i32) -> (i32, i32) {
    %c0_i32 = arith.constant 0 : i32
    %c0_i32_0 = arith.constant 0 : i32
    %c0_i32_1 = arith.constant 0 : i32
    return %c0_i32, %c0_i32_0 : i32, i32
  }
  func.func @transform_6(%arg0: i32) -> (i32, i32, i32) {
    %c0_i32 = arith.constant 0 : i32
    %c0_i32_0 = arith.constant 0 : i32
    %c0_i32_1 = arith.constant 0 : i32
    return %arg0, %c0_i32, %c0_i32_0 : i32, i32, i32
  }
}

</mosaic_0001>

<llo_original>
// kernel: patch_merging.1
$region0: #{patch_merging.1}
  #allocation0 [shape = 'u32[]', space=smem, size = 0x4, offset = 0x4, fixed_abs, tag = 'smem constant byte address 0x4 - core index']
  #allocation1 [shape = 'u32[72,128]{1,0:T(1,128)}', space=vmem, size = 0x9000, scoped, tag = 'internal scratch']
  %s0 = inlined_call_operand.vmem [shape: f32[16,2,8,8], index: 0, kind: input, shape index: {}, may-alias: {0,1}]
  %s1 = inlined_call_operand.vmem [shape: f32[16,2,8,8], index: 1, kind: input, shape index: {}, may-alias: {0,1}]
  %s2 = inlined_call_operand.vmem [shape: f32[1,16], index: 2, kind: input, shape index: {}]
  %s3 = inlined_call_operand.vmem [shape: f32[1,16], index: 3, kind: input, shape index: {}]
  %s4 = inlined_call_operand.vmem [shape: bf16[16,8], index: 4, kind: input, shape index: {}]
  %s5 = inlined_call_operand.vmem [shape: f32[1,8], index: 5, kind: input, shape index: {}]
  %s6 = inlined_call_operand.vmem [shape: f32[16,8,8], index: 6, kind: output, shape index: {}]
  %s7 = sld [smem:[#allocation0]]
  $region110: #{patch_merging.1} parent=0
    _
  %s9 = ssub.s32 1, %s7
  %s10 = scalar_select 0, %s9, %s7
  $region1: #{patch_merging.1} parent=0
    #allocation2 [shape = 'u8[65536]{0}', space=vmem, size = 0x10000, scoped, tag = 'input window, operand 0, single buffered']
    #allocation3 [shape = 'u8[65536]{0}', space=vmem, size = 0x10000, scoped, tag = 'input window, operand 1, single buffered']
    // Predicated region
    $region2: #{patch_merging.1} parent=1 // pred_check
      _
    $region3: #{patch_merging.1} parent=1 // pred_check_branch
      %12 = sbr.rel (0) target = $region5
    $region4: #{patch_merging.1} parent=1 // pred_region
      // Predicated region
      $region6: #{patch_merging.1} parent=4 // pred_check
        _
      $region7: #{patch_merging.1} parent=4 // pred_check_branch
        %14 = sbr.rel (0) target = $region9
      $region8: #{patch_merging.1} parent=4 // pred_region
        // Predicated region
        $region10: #{patch_merging.1} parent=8 // pred_check
          _
        $region11: #{patch_merging.1} parent=8 // pred_check_branch
          %16 = sbr.rel (0) target = $region13
        $region12: #{patch_merging.1} parent=8 // pred_region
          // Predicated region
          $region25: #{patch_merging.1} parent=12 // pred_check
            _
          $region26: #{patch_merging.1} parent=12 // pred_check_branch
            %62 = sbr.rel (0) target = $region28
          $region27: #{patch_merging.1} parent=12 // pred_region
            loop: start=0, step=1, limit=1
            $region29: #{patch_merging.1} parent=27 // loop_pre_header
              _
            $region30: #{patch_merging.1} parent=27 // loop_header
              %s64 = sphi 0, %s68
              %p65 = scmp.ge.s32.totalorder %s64, 1
              %s69 = sphi %s0, %s0
              %s70 = sphi [#allocation2], [#allocation2]
            $region31: #{patch_merging.1} parent=27 // loop_header_branch
              %67 = sbr.rel (%p65) target = $region35
            $region32: #{patch_merging.1} parent=27 // loop_body
              %v71 = vld [vmem:[%s69] sm:$0xff]
              %72 = vst [vmem:[%s70] sm:$0xff] %v71
              %v73 = vld [vmem:[%s69 + $0x10] sm:$0xff]
              %74 = vst [vmem:[%s70 + $0x8] sm:$0xff] %v73
              %v75 = vld [vmem:[%s69 + $0x20] sm:$0xff]
              %76 = vst [vmem:[%s70 + $0x10] sm:$0xff] %v75
              %v77 = vld [vmem:[%s69 + $0x30] sm:$0xff]
              %78 = vst [vmem:[%s70 + $0x18] sm:$0xff] %v77
              %v79 = vld [vmem:[%s69 + $0x40] sm:$0xff]
              %80 = vst [vmem:[%s70 + $0x20] sm:$0xff] %v79
              %v81 = vld [vmem:[%s69 + $0x50] sm:$0xff]
              %82 = vst [vmem:[%s70 + $0x28] sm:$0xff] %v81
              %v83 = vld [vmem:[%s69 + $0x60] sm:$0xff]
              %84 = vst [vmem:[%s70 + $0x30] sm:$0xff] %v83
              %v85 = vld [vmem:[%s69 + $0x70] sm:$0xff]
              %86 = vst [vmem:[%s70 + $0x38] sm:$0xff] %v85
              %v87 = vld [vmem:[%s69 + $0x80] sm:$0xff]
              %88 = vst [vmem:[%s70 + $0x40] sm:$0xff] %v87
              %v89 = vld [vmem:[%s69 + $0x90] sm:$0xff]
              %90 = vst [vmem:[%s70 + $0x48] sm:$0xff] %v89
              %v91 = vld [vmem:[%s69 + $0xa0] sm:$0xff]
              %92 = vst [vmem:[%s70 + $0x50] sm:$0xff] %v91
              %v93 = vld [vmem:[%s69 + $0xb0] sm:$0xff]
              %94 = vst [vmem:[%s70 + $0x58] sm:$0xff] %v93
              %v95 = vld [vmem:[%s69 + $0xc0] sm:$0xff]
              %96 = vst [vmem:[%s70 + $0x60] sm:$0xff] %v95
              %v97 = vld [vmem:[%s69 + $0xd0] sm:$0xff]
              %98 = vst [vmem:[%s70 + $0x68] sm:$0xff] %v97
              %v99 = vld [vmem:[%s69 + $0xe0] sm:$0xff]
              %100 = vst [vmem:[%s70 + $0x70] sm:$0xff] %v99
              %v101 = vld [vmem:[%s69 + $0xf0] sm:$0xff]
              %102 = vst [vmem:[%s70 + $0x78] sm:$0xff] %v101
            $region33: #{patch_merging.1} parent=27 // loop_footer
              %s68 = sadd.s32 1, %s64
            $region34: #{patch_merging.1} parent=27 // loop_footer_branch
              %63 = sbr.rel target = $region30
            $region35: #{patch_merging.1} parent=27 // loop_exit
              _
          $region28: #{patch_merging.1} parent=12 // pred_fallthru
            _
          // Predicated region
          $region36: #{patch_merging.1} parent=12 // pred_check
            _
          $region37: #{patch_merging.1} parent=12 // pred_check_branch
            %104 = sbr.rel target = $region39
          $region38: #{patch_merging.1} parent=12 // pred_region
            _
          $region39: #{patch_merging.1} parent=12 // pred_fallthru
            _
        $region13: #{patch_merging.1} parent=8 // pred_fallthru
          _
        // Predicated region
        $region14: #{patch_merging.1} parent=8 // pred_check
          _
        $region15: #{patch_merging.1} parent=8 // pred_check_branch
          %18 = sbr.rel target = $region17
        $region16: #{patch_merging.1} parent=8 // pred_region
          %s20 = ssub.s32 256, 1
          loop: start=0, step=1, limit=1
          $region18: #{patch_merging.1} parent=16 // loop_pre_header
            _
          $region19: #{patch_merging.1} parent=16 // loop_header
            %s22 = sphi 0, %s26
            %p23 = scmp.ge.s32.totalorder %s22, 1
            %s27 = sphi %s0, %s0
            %s28 = sphi [#allocation2], [#allocation2]
          $region20: #{patch_merging.1} parent=16 // loop_header_branch
            %25 = sbr.rel (%p23) target = $region24
          $region21: #{patch_merging.1} parent=16 // loop_body
            %v29 = vld [vmem:[%s27] sm:%s20]
            %30 = vst [vmem:[%s28] sm:%s20] %v29
            %v31 = vld [vmem:[%s27 + $0x10] sm:%s20]
            %32 = vst [vmem:[%s28 + $0x8] sm:%s20] %v31
            %v33 = vld [vmem:[%s27 + $0x20] sm:%s20]
            %34 = vst [vmem:[%s28 + $0x10] sm:%s20] %v33
            %v35 = vld [vmem:[%s27 + $0x30] sm:%s20]
            %36 = vst [vmem:[%s28 + $0x18] sm:%s20] %v35
            %v37 = vld [vmem:[%s27 + $0x40] sm:%s20]
            %38 = vst [vmem:[%s28 + $0x20] sm:%s20] %v37
            %v39 = vld [vmem:[%s27 + $0x50] sm:%s20]
            %40 = vst [vmem:[%s28 + $0x28] sm:%s20] %v39
            %v41 = vld [vmem:[%s27 + $0x60] sm:%s20]
            %42 = vst [vmem:[%s28 + $0x30] sm:%s20] %v41
            %v43 = vld [vmem:[%s27 + $0x70] sm:%s20]
            %44 = vst [vmem:[%s28 + $0x38] sm:%s20] %v43
            %v45 = vld [vmem:[%s27 + $0x80] sm:%s20]
            %46 = vst [vmem:[%s28 + $0x40] sm:%s20] %v45
            %v47 = vld [vmem:[%s27 + $0x90] sm:%s20]
            %48 = vst [vmem:[%s28 + $0x48] sm:%s20] %v47
            %v49 = vld [vmem:[%s27 + $0xa0] sm:%s20]
            %50 = vst [vmem:[%s28 + $0x50] sm:%s20] %v49
            %v51 = vld [vmem:[%s27 + $0xb0] sm:%s20]
            %52 = vst [vmem:[%s28 + $0x58] sm:%s20] %v51
            %v53 = vld [vmem:[%s27 + $0xc0] sm:%s20]
            %54 = vst [vmem:[%s28 + $0x60] sm:%s20] %v53
            %v55 = vld [vmem:[%s27 + $0xd0] sm:%s20]
            %56 = vst [vmem:[%s28 + $0x68] sm:%s20] %v55
            %v57 = vld [vmem:[%s27 + $0xe0] sm:%s20]
            %58 = vst [vmem:[%s28 + $0x70] sm:%s20] %v57
            %v59 = vld [vmem:[%s27 + $0xf0] sm:%s20]
            %60 = vst [vmem:[%s28 + $0x78] sm:%s20] %v59
          $region22: #{patch_merging.1} parent=16 // loop_footer
            %s26 = sadd.s32 1, %s22
          $region23: #{patch_merging.1} parent=16 // loop_footer_branch
            %21 = sbr.rel target = $region19
          $region24: #{patch_merging.1} parent=16 // loop_exit
            _
        $region17: #{patch_merging.1} parent=8 // pred_fallthru
          _
      $region9: #{patch_merging.1} parent=4 // pred_fallthru
        _
      %105 = vnop
    $region5: #{patch_merging.1} parent=1 // pred_fallthru
      _
    // Predicated region
    $region40: #{patch_merging.1} parent=1 // pred_check
      _
    $region41: #{patch_merging.1} parent=1 // pred_check_branch
      %107 = sbr.rel (0) target = $region43
    $region42: #{patch_merging.1} parent=1 // pred_region
      %s108 = scalar_lea.vmem %s1, 8
      // Predicated region
      $region44: #{patch_merging.1} parent=42 // pred_check
        _
      $region45: #{patch_merging.1} parent=42 // pred_check_branch
        %110 = sbr.rel (0) target = $region47
      $region46: #{patch_merging.1} parent=42 // pred_region
        // Predicated region
        $region48: #{patch_merging.1} parent=46 // pred_check
          _
        $region49: #{patch_merging.1} parent=46 // pred_check_branch
          %112 = sbr.rel (0) target = $region51
        $region50: #{patch_merging.1} parent=46 // pred_region
          // Predicated region
          $region63: #{patch_merging.1} parent=50 // pred_check
            _
          $region64: #{patch_merging.1} parent=50 // pred_check_branch
            %158 = sbr.rel (0) target = $region66
          $region65: #{patch_merging.1} parent=50 // pred_region
            loop: start=0, step=1, limit=1
            $region67: #{patch_merging.1} parent=65 // loop_pre_header
              _
            $region68: #{patch_merging.1} parent=65 // loop_header
              %s160 = sphi 0, %s164
              %p161 = scmp.ge.s32.totalorder %s160, 1
              %s165 = sphi %s108, %s108
              %s166 = sphi [#allocation3], [#allocation3]
            $region69: #{patch_merging.1} parent=65 // loop_header_branch
              %163 = sbr.rel (%p161) target = $region73
            $region70: #{patch_merging.1} parent=65 // loop_body
              %v167 = vld [vmem:[%s165] sm:$0xff]
              %168 = vst [vmem:[%s166] sm:$0xff] %v167
              %v169 = vld [vmem:[%s165 + $0x10] sm:$0xff]
              %170 = vst [vmem:[%s166 + $0x8] sm:$0xff] %v169
              %v171 = vld [vmem:[%s165 + $0x20] sm:$0xff]
              %172 = vst [vmem:[%s166 + $0x10] sm:$0xff] %v171
              %v173 = vld [vmem:[%s165 + $0x30] sm:$0xff]
              %174 = vst [vmem:[%s166 + $0x18] sm:$0xff] %v173
              %v175 = vld [vmem:[%s165 + $0x40] sm:$0xff]
              %176 = vst [vmem:[%s166 + $0x20] sm:$0xff] %v175
              %v177 = vld [vmem:[%s165 + $0x50] sm:$0xff]
              %178 = vst [vmem:[%s166 + $0x28] sm:$0xff] %v177
              %v179 = vld [vmem:[%s165 + $0x60] sm:$0xff]
              %180 = vst [vmem:[%s166 + $0x30] sm:$0xff] %v179
              %v181 = vld [vmem:[%s165 + $0x70] sm:$0xff]
              %182 = vst [vmem:[%s166 + $0x38] sm:$0xff] %v181
              %v183 = vld [vmem:[%s165 + $0x80] sm:$0xff]
              %184 = vst [vmem:[%s166 + $0x40] sm:$0xff] %v183
              %v185 = vld [vmem:[%s165 + $0x90] sm:$0xff]
              %186 = vst [vmem:[%s166 + $0x48] sm:$0xff] %v185
              %v187 = vld [vmem:[%s165 + $0xa0] sm:$0xff]
              %188 = vst [vmem:[%s166 + $0x50] sm:$0xff] %v187
              %v189 = vld [vmem:[%s165 + $0xb0] sm:$0xff]
              %190 = vst [vmem:[%s166 + $0x58] sm:$0xff] %v189
              %v191 = vld [vmem:[%s165 + $0xc0] sm:$0xff]
              %192 = vst [vmem:[%s166 + $0x60] sm:$0xff] %v191
              %v193 = vld [vmem:[%s165 + $0xd0] sm:$0xff]
              %194 = vst [vmem:[%s166 + $0x68] sm:$0xff] %v193
              %v195 = vld [vmem:[%s165 + $0xe0] sm:$0xff]
              %196 = vst [vmem:[%s166 + $0x70] sm:$0xff] %v195
              %v197 = vld [vmem:[%s165 + $0xf0] sm:$0xff]
              %198 = vst [vmem:[%s166 + $0x78] sm:$0xff] %v197
            $region71: #{patch_merging.1} parent=65 // loop_footer
              %s164 = sadd.s32 1, %s160
            $region72: #{patch_merging.1} parent=65 // loop_footer_branch
              %159 = sbr.rel target = $region68
            $region73: #{patch_merging.1} parent=65 // loop_exit
              _
          $region66: #{patch_merging.1} parent=50 // pred_fallthru
            _
          // Predicated region
          $region74: #{patch_merging.1} parent=50 // pred_check
            _
          $region75: #{patch_merging.1} parent=50 // pred_check_branch
            %200 = sbr.rel target = $region77
          $region76: #{patch_merging.1} parent=50 // pred_region
            _
          $region77: #{patch_merging.1} parent=50 // pred_fallthru
            _
        $region51: #{patch_merging.1} parent=46 // pred_fallthru
          _
        // Predicated region
        $region52: #{patch_merging.1} parent=46 // pred_check
          _
        $region53: #{patch_merging.1} parent=46 // pred_check_branch
          %114 = sbr.rel target = $region55
        $region54: #{patch_merging.1} parent=46 // pred_region
          %s116 = ssub.s32 256, 1
          loop: start=0, step=1, limit=1
          $region56: #{patch_merging.1} parent=54 // loop_pre_header
            _
          $region57: #{patch_merging.1} parent=54 // loop_header
            %s118 = sphi 0, %s122
            %p119 = scmp.ge.s32.totalorder %s118, 1
            %s123 = sphi %s108, %s108
            %s124 = sphi [#allocation3], [#allocation3]
          $region58: #{patch_merging.1} parent=54 // loop_header_branch
            %121 = sbr.rel (%p119) target = $region62
          $region59: #{patch_merging.1} parent=54 // loop_body
            %v125 = vld [vmem:[%s123] sm:%s116]
            %126 = vst [vmem:[%s124] sm:%s116] %v125
            %v127 = vld [vmem:[%s123 + $0x10] sm:%s116]
            %128 = vst [vmem:[%s124 + $0x8] sm:%s116] %v127
            %v129 = vld [vmem:[%s123 + $0x20] sm:%s116]
            %130 = vst [vmem:[%s124 + $0x10] sm:%s116] %v129
            %v131 = vld [vmem:[%s123 + $0x30] sm:%s116]
            %132 = vst [vmem:[%s124 + $0x18] sm:%s116] %v131
            %v133 = vld [vmem:[%s123 + $0x40] sm:%s116]
            %134 = vst [vmem:[%s124 + $0x20] sm:%s116] %v133
            %v135 = vld [vmem:[%s123 + $0x50] sm:%s116]
            %136 = vst [vmem:[%s124 + $0x28] sm:%s116] %v135
            %v137 = vld [vmem:[%s123 + $0x60] sm:%s116]
            %138 = vst [vmem:[%s124 + $0x30] sm:%s116] %v137
            %v139 = vld [vmem:[%s123 + $0x70] sm:%s116]
            %140 = vst [vmem:[%s124 + $0x38] sm:%s116] %v139
            %v141 = vld [vmem:[%s123 + $0x80] sm:%s116]
            %142 = vst [vmem:[%s124 + $0x40] sm:%s116] %v141
            %v143 = vld [vmem:[%s123 + $0x90] sm:%s116]
            %144 = vst [vmem:[%s124 + $0x48] sm:%s116] %v143
            %v145 = vld [vmem:[%s123 + $0xa0] sm:%s116]
            %146 = vst [vmem:[%s124 + $0x50] sm:%s116] %v145
            %v147 = vld [vmem:[%s123 + $0xb0] sm:%s116]
            %148 = vst [vmem:[%s124 + $0x58] sm:%s116] %v147
            %v149 = vld [vmem:[%s123 + $0xc0] sm:%s116]
            %150 = vst [vmem:[%s124 + $0x60] sm:%s116] %v149
            %v151 = vld [vmem:[%s123 + $0xd0] sm:%s116]
            %152 = vst [vmem:[%s124 + $0x68] sm:%s116] %v151
            %v153 = vld [vmem:[%s123 + $0xe0] sm:%s116]
            %154 = vst [vmem:[%s124 + $0x70] sm:%s116] %v153
            %v155 = vld [vmem:[%s123 + $0xf0] sm:%s116]
            %156 = vst [vmem:[%s124 + $0x78] sm:%s116] %v155
          $region60: #{patch_merging.1} parent=54 // loop_footer
            %s122 = sadd.s32 1, %s118
          $region61: #{patch_merging.1} parent=54 // loop_footer_branch
            %117 = sbr.rel target = $region57
          $region62: #{patch_merging.1} parent=54 // loop_exit
            _
        $region55: #{patch_merging.1} parent=46 // pred_fallthru
          _
      $region47: #{patch_merging.1} parent=42 // pred_fallthru
        _
      %201 = vnop
    $region43: #{patch_merging.1} parent=1 // pred_fallthru
      _
    // Predicated region
    $region78: #{patch_merging.1} parent=1 // pred_check
      _
    $region79: #{patch_merging.1} parent=1 // pred_check_branch
      %203 = sbr.rel (0) target = $region81
    $region80: #{patch_merging.1} parent=1 // pred_region
      _
    $region81: #{patch_merging.1} parent=1 // pred_fallthru
      _
    // Predicated region
    $region82: #{patch_merging.1} parent=1 // pred_check
      _
    $region83: #{patch_merging.1} parent=1 // pred_check_branch
      %205 = sbr.rel (0) target = $region85
    $region84: #{patch_merging.1} parent=1 // pred_region
      _
    $region85: #{patch_merging.1} parent=1 // pred_fallthru
      _
    // Predicated region
    $region86: #{patch_merging.1} parent=1 // pred_check
      _
    $region87: #{patch_merging.1} parent=1 // pred_check_branch
      %207 = sbr.rel (0) target = $region89
    $region88: #{patch_merging.1} parent=1 // pred_region
      _
    $region89: #{patch_merging.1} parent=1 // pred_fallthru
      _
    // Predicated region
    $region90: #{patch_merging.1} parent=1 // pred_check
      _
    $region91: #{patch_merging.1} parent=1 // pred_check_branch
      %209 = sbr.rel (0) target = $region93
    $region92: #{patch_merging.1} parent=1 // pred_region
      _
    $region93: #{patch_merging.1} parent=1 // pred_fallthru
      _
    // Predicated region
    $region94: #{patch_merging.1} parent=1 // pred_check
      _
    $region95: #{patch_merging.1} parent=1 // pred_check_branch
      %211 = sbr.rel (0) target = $region97
    $region96: #{patch_merging.1} parent=1 // pred_region
      _
    $region97: #{patch_merging.1} parent=1 // pred_fallthru
      _
    // Predicated region
    $region98: #{patch_merging.1} parent=1 // pred_check
      _
    $region99: #{patch_merging.1} parent=1 // pred_check_branch
      %213 = sbr.rel (0) target = $region101
    $region100: #{patch_merging.1} parent=1 // pred_region
      _
    $region101: #{patch_merging.1} parent=1 // pred_fallthru
      _
    %v215 = vld [vmem:[#allocation2] sm:$0xff]
    %v216 = vld [vmem:[#allocation2 + $0x8] sm:$0xff]
    %v217 = vld [vmem:[#allocation2 + $0x10] sm:$0xff]
    %v218 = vld [vmem:[#allocation2 + $0x18] sm:$0xff]
    %v219 = vld [vmem:[#allocation2 + $0x20] sm:$0xff]
    %v220 = vld [vmem:[#allocation2 + $0x28] sm:$0xff]
    %v221 = vld [vmem:[#allocation2 + $0x30] sm:$0xff]
    %v222 = vld [vmem:[#allocation2 + $0x38] sm:$0xff]
    %v223 = vld [vmem:[#allocation2 + $0x40] sm:$0xff]
    %v224 = vld [vmem:[#allocation2 + $0x48] sm:$0xff]
    %v225 = vld [vmem:[#allocation2 + $0x50] sm:$0xff]
    %v226 = vld [vmem:[#allocation2 + $0x58] sm:$0xff]
    %v227 = vld [vmem:[#allocation2 + $0x60] sm:$0xff]
    %v228 = vld [vmem:[#allocation2 + $0x68] sm:$0xff]
    %v229 = vld [vmem:[#allocation2 + $0x70] sm:$0xff]
    %v230 = vld [vmem:[#allocation2 + $0x78] sm:$0xff]
    %v231 = vld [vmem:[#allocation3] sm:$0xff]
    %v232 = vld [vmem:[#allocation3 + $0x8] sm:$0xff]
    %v233 = vld [vmem:[#allocation3 + $0x10] sm:$0xff]
    %v234 = vld [vmem:[#allocation3 + $0x18] sm:$0xff]
    %v235 = vld [vmem:[#allocation3 + $0x20] sm:$0xff]
    %v236 = vld [vmem:[#allocation3 + $0x28] sm:$0xff]
    %v237 = vld [vmem:[#allocation3 + $0x30] sm:$0xff]
    %v238 = vld [vmem:[#allocation3 + $0x38] sm:$0xff]
    %v239 = vld [vmem:[#allocation3 + $0x40] sm:$0xff]
    %v240 = vld [vmem:[#allocation3 + $0x48] sm:$0xff]
    %v241 = vld [vmem:[#allocation3 + $0x50] sm:$0xff]
    %v242 = vld [vmem:[#allocation3 + $0x58] sm:$0xff]
    %v243 = vld [vmem:[#allocation3 + $0x60] sm:$0xff]
    %v244 = vld [vmem:[#allocation3 + $0x68] sm:$0xff]
    %v245 = vld [vmem:[#allocation3 + $0x70] sm:$0xff]
    %v246 = vld [vmem:[#allocation3 + $0x78] sm:$0xff]
    %263 = vrot.lane.b32.xlu0 %v231, 8
    %v264 = vpop.permute.xlu0 %263
    %265 = vrot.lane.b32.xlu0 %v232, 8
    %v266 = vpop.permute.xlu0 %265
    %267 = vrot.lane.b32.xlu0 %v233, 8
    %v268 = vpop.permute.xlu0 %267
    %269 = vrot.lane.b32.xlu0 %v234, 8
    %v270 = vpop.permute.xlu0 %269
    %271 = vrot.lane.b32.xlu0 %v235, 8
    %v272 = vpop.permute.xlu0 %271
    %273 = vrot.lane.b32.xlu0 %v236, 8
    %v274 = vpop.permute.xlu0 %273
    %275 = vrot.lane.b32.xlu0 %v237, 8
    %v276 = vpop.permute.xlu0 %275
    %277 = vrot.lane.b32.xlu0 %v238, 8
    %v278 = vpop.permute.xlu0 %277
    %279 = vrot.lane.b32.xlu0 %v239, 8
    %v280 = vpop.permute.xlu0 %279
    %281 = vrot.lane.b32.xlu0 %v240, 8
    %v282 = vpop.permute.xlu0 %281
    %283 = vrot.lane.b32.xlu0 %v241, 8
    %v284 = vpop.permute.xlu0 %283
    %285 = vrot.lane.b32.xlu0 %v242, 8
    %v286 = vpop.permute.xlu0 %285
    %287 = vrot.lane.b32.xlu0 %v243, 8
    %v288 = vpop.permute.xlu0 %287
    %289 = vrot.lane.b32.xlu0 %v244, 8
    %v290 = vpop.permute.xlu0 %289
    %291 = vrot.lane.b32.xlu0 %v245, 8
    %v292 = vpop.permute.xlu0 %291
    %293 = vrot.lane.b32.xlu0 %v246, 8
    %v294 = vpop.permute.xlu0 %293
    %vm311 = vcmask 64512
    %v312 = vsel %vm311, %v215, %v264
    %v313 = vsel %vm311, %v216, %v266
    %v314 = vsel %vm311, %v217, %v268
    %v315 = vsel %vm311, %v218, %v270
    %v316 = vsel %vm311, %v219, %v272
    %v317 = vsel %vm311, %v220, %v274
    %v318 = vsel %vm311, %v221, %v276
    %v319 = vsel %vm311, %v222, %v278
    %v320 = vsel %vm311, %v223, %v280
    %v321 = vsel %vm311, %v224, %v282
    %v322 = vsel %vm311, %v225, %v284
    %v323 = vsel %vm311, %v226, %v286
    %v324 = vsel %vm311, %v227, %v288
    %v325 = vsel %vm311, %v228, %v290
    %v326 = vsel %vm311, %v229, %v292
    %v327 = vsel %vm311, %v230, %v294
    %vm328 = vcmask 130048
    %v329 = vsel %vm328, %v312, 0.0
    %330 = vadd.xlane.f32.xlu0 %v329
    %v331 = vpop.xlane.xlu0 %330
    %v332 = vsel %vm328, %v313, 0.0
    %333 = vadd.xlane.f32.xlu0 %v332
    %v334 = vpop.xlane.xlu0 %333
    %v335 = vsel %vm328, %v314, 0.0
    %336 = vadd.xlane.f32.xlu0 %v335
    %v337 = vpop.xlane.xlu0 %336
    %v338 = vsel %vm328, %v315, 0.0
    %339 = vadd.xlane.f32.xlu0 %v338
    %v340 = vpop.xlane.xlu0 %339
    %v341 = vsel %vm328, %v316, 0.0
    %342 = vadd.xlane.f32.xlu0 %v341
    %v343 = vpop.xlane.xlu0 %342
    %v344 = vsel %vm328, %v317, 0.0
    %345 = vadd.xlane.f32.xlu0 %v344
    %v346 = vpop.xlane.xlu0 %345
    %v347 = vsel %vm328, %v318, 0.0
    %348 = vadd.xlane.f32.xlu0 %v347
    %v349 = vpop.xlane.xlu0 %348
    %v350 = vsel %vm328, %v319, 0.0
    %351 = vadd.xlane.f32.xlu0 %v350
    %v352 = vpop.xlane.xlu0 %351
    %v353 = vsel %vm328, %v320, 0.0
    %354 = vadd.xlane.f32.xlu0 %v353
    %v355 = vpop.xlane.xlu0 %354
    %v356 = vsel %vm328, %v321, 0.0
    %357 = vadd.xlane.f32.xlu0 %v356
    %v358 = vpop.xlane.xlu0 %357
    %v359 = vsel %vm328, %v322, 0.0
    %360 = vadd.xlane.f32.xlu0 %v359
    %v361 = vpop.xlane.xlu0 %360
    %v362 = vsel %vm328, %v323, 0.0
    %363 = vadd.xlane.f32.xlu0 %v362
    %v364 = vpop.xlane.xlu0 %363
    %v365 = vsel %vm328, %v324, 0.0
    %366 = vadd.xlane.f32.xlu0 %v365
    %v367 = vpop.xlane.xlu0 %366
    %v368 = vsel %vm328, %v325, 0.0
    %369 = vadd.xlane.f32.xlu0 %v368
    %v370 = vpop.xlane.xlu0 %369
    %v371 = vsel %vm328, %v326, 0.0
    %372 = vadd.xlane.f32.xlu0 %v371
    %v373 = vpop.xlane.xlu0 %372
    %v374 = vsel %vm328, %v327, 0.0
    %375 = vadd.xlane.f32.xlu0 %v374
    %v376 = vpop.xlane.xlu0 %375
    %v377 = vrcp.pop 16.0
    %v378 = vmul.f32 16.0, %v377
    %v379 = vsub.f32 1.0, %v378
    %v380 = vmul.f32 %v377, %v379
    %v381 = vadd.f32 %v377, %v380
    %vm382 = vweird.f32 %v377
    %v383 = vsel %vm382, %v377, %v381
    %v384 = vmul.f32 %v331, %v383
    %v385 = vmul.f32 %v334, %v383
    %v386 = vmul.f32 %v337, %v383
    %v387 = vmul.f32 %v340, %v383
    %v388 = vmul.f32 %v343, %v383
    %v389 = vmul.f32 %v346, %v383
    %v390 = vmul.f32 %v349, %v383
    %v391 = vmul.f32 %v352, %v383
    %v392 = vmul.f32 %v355, %v383
    %v393 = vmul.f32 %v358, %v383
    %v394 = vmul.f32 %v361, %v383
    %v395 = vmul.f32 %v364, %v383
    %v396 = vmul.f32 %v367, %v383
    %v397 = vmul.f32 %v370, %v383
    %v398 = vmul.f32 %v373, %v383
    %v399 = vmul.f32 %v376, %v383
    %v400 = vsub.f32 %v312, %v384
    %v401 = vsub.f32 %v313, %v385
    %v402 = vsub.f32 %v314, %v386
    %v403 = vsub.f32 %v315, %v387
    %v404 = vsub.f32 %v316, %v388
    %v405 = vsub.f32 %v317, %v389
    %v406 = vsub.f32 %v318, %v390
    %v407 = vsub.f32 %v319, %v391
    %v408 = vsub.f32 %v320, %v392
    %v409 = vsub.f32 %v321, %v393
    %v410 = vsub.f32 %v322, %v394
    %v411 = vsub.f32 %v323, %v395
    %v412 = vsub.f32 %v324, %v396
    %v413 = vsub.f32 %v325, %v397
    %v414 = vsub.f32 %v326, %v398
    %v415 = vsub.f32 %v327, %v399
    %v416 = vmul.f32 %v400, %v400
    %v417 = vmul.f32 %v401, %v401
    %v418 = vmul.f32 %v402, %v402
    %v419 = vmul.f32 %v403, %v403
    %v420 = vmul.f32 %v404, %v404
    %v421 = vmul.f32 %v405, %v405
    %v422 = vmul.f32 %v406, %v406
    %v423 = vmul.f32 %v407, %v407
    %v424 = vmul.f32 %v408, %v408
    %v425 = vmul.f32 %v409, %v409
    %v426 = vmul.f32 %v410, %v410
    %v427 = vmul.f32 %v411, %v411
    %v428 = vmul.f32 %v412, %v412
    %v429 = vmul.f32 %v413, %v413
    %v430 = vmul.f32 %v414, %v414
    %v431 = vmul.f32 %v415, %v415
    %v432 = vsel %vm328, %v416, 0.0
    %433 = vadd.xlane.f32.xlu0 %v432
    %v434 = vpop.xlane.xlu0 %433
    %v435 = vsel %vm328, %v417, 0.0
    %436 = vadd.xlane.f32.xlu0 %v435
    %v437 = vpop.xlane.xlu0 %436
    %v438 = vsel %vm328, %v418, 0.0
    %439 = vadd.xlane.f32.xlu0 %v438
    %v440 = vpop.xlane.xlu0 %439
    %v441 = vsel %vm328, %v419, 0.0
    %442 = vadd.xlane.f32.xlu0 %v441
    %v443 = vpop.xlane.xlu0 %442
    %v444 = vsel %vm328, %v420, 0.0
    %445 = vadd.xlane.f32.xlu0 %v444
    %v446 = vpop.xlane.xlu0 %445
    %v447 = vsel %vm328, %v421, 0.0
    %448 = vadd.xlane.f32.xlu0 %v447
    %v449 = vpop.xlane.xlu0 %448
    %v450 = vsel %vm328, %v422, 0.0
    %451 = vadd.xlane.f32.xlu0 %v450
    %v452 = vpop.xlane.xlu0 %451
    %v453 = vsel %vm328, %v423, 0.0
    %454 = vadd.xlane.f32.xlu0 %v453
    %v455 = vpop.xlane.xlu0 %454
    %v456 = vsel %vm328, %v424, 0.0
    %457 = vadd.xlane.f32.xlu0 %v456
    %v458 = vpop.xlane.xlu0 %457
    %v459 = vsel %vm328, %v425, 0.0
    %460 = vadd.xlane.f32.xlu0 %v459
    %v461 = vpop.xlane.xlu0 %460
    %v462 = vsel %vm328, %v426, 0.0
    %463 = vadd.xlane.f32.xlu0 %v462
    %v464 = vpop.xlane.xlu0 %463
    %v465 = vsel %vm328, %v427, 0.0
    %466 = vadd.xlane.f32.xlu0 %v465
    %v467 = vpop.xlane.xlu0 %466
    %v468 = vsel %vm328, %v428, 0.0
    %469 = vadd.xlane.f32.xlu0 %v468
    %v470 = vpop.xlane.xlu0 %469
    %v471 = vsel %vm328, %v429, 0.0
    %472 = vadd.xlane.f32.xlu0 %v471
    %v473 = vpop.xlane.xlu0 %472
    %v474 = vsel %vm328, %v430, 0.0
    %475 = vadd.xlane.f32.xlu0 %v474
    %v476 = vpop.xlane.xlu0 %475
    %v477 = vsel %vm328, %v431, 0.0
    %478 = vadd.xlane.f32.xlu0 %v477
    %v479 = vpop.xlane.xlu0 %478
    %v480 = vmul.f32 %v434, %v383
    %v481 = vmul.f32 %v437, %v383
    %v482 = vmul.f32 %v440, %v383
    %v483 = vmul.f32 %v443, %v383
    %v484 = vmul.f32 %v446, %v383
    %v485 = vmul.f32 %v449, %v383
    %v486 = vmul.f32 %v452, %v383
    %v487 = vmul.f32 %v455, %v383
    %v488 = vmul.f32 %v458, %v383
    %v489 = vmul.f32 %v461, %v383
    %v490 = vmul.f32 %v464, %v383
    %v491 = vmul.f32 %v467, %v383
    %v492 = vmul.f32 %v470, %v383
    %v493 = vmul.f32 %v473, %v383
    %v494 = vmul.f32 %v476, %v383
    %v495 = vmul.f32 %v479, %v383
    %v496 = vadd.f32 %v480, 1e-05
    %v497 = vadd.f32 %v481, 1e-05
    %v498 = vadd.f32 %v482, 1e-05
    %v499 = vadd.f32 %v483, 1e-05
    %v500 = vadd.f32 %v484, 1e-05
    %v501 = vadd.f32 %v485, 1e-05
    %v502 = vadd.f32 %v486, 1e-05
    %v503 = vadd.f32 %v487, 1e-05
    %v504 = vadd.f32 %v488, 1e-05
    %v505 = vadd.f32 %v489, 1e-05
    %v506 = vadd.f32 %v490, 1e-05
    %v507 = vadd.f32 %v491, 1e-05
    %v508 = vadd.f32 %v492, 1e-05
    %v509 = vadd.f32 %v493, 1e-05
    %v510 = vadd.f32 %v494, 1e-05
    %v511 = vadd.f32 %v495, 1e-05
    %v512 = vrsqrt.pop %v496
    %v513 = vmul.f32 %v512, %v496
    %v514 = vmul.f32 %v513, %v512
    %v515 = vmul.f32 0.5, %v514
    %v516 = vsub.f32 1.5, %v515
    %v517 = vmul.f32 %v512, %v516
    %vm518 = vweird.f32 %v496
    %vm519 = vweird.f32 %v512
    %vm520 = vmor %vm518, %vm519
    %v521 = vsel %vm520, %v512, %v517
    %v522 = vrsqrt.pop %v497
    %v523 = vmul.f32 %v522, %v497
    %v524 = vmul.f32 %v523, %v522
    %v525 = vmul.f32 0.5, %v524
    %v526 = vsub.f32 1.5, %v525
    %v527 = vmul.f32 %v522, %v526
    %vm528 = vweird.f32 %v497
    %vm529 = vweird.f32 %v522
    %vm530 = vmor %vm528, %vm529
    %v531 = vsel %vm530, %v522, %v527
    %v532 = vrsqrt.pop %v498
    %v533 = vmul.f32 %v532, %v498
    %v534 = vmul.f32 %v533, %v532
    %v535 = vmul.f32 0.5, %v534
    %v536 = vsub.f32 1.5, %v535
    %v537 = vmul.f32 %v532, %v536
    %vm538 = vweird.f32 %v498
    %vm539 = vweird.f32 %v532
    %vm540 = vmor %vm538, %vm539
    %v541 = vsel %vm540, %v532, %v537
    %v542 = vrsqrt.pop %v499
    %v543 = vmul.f32 %v542, %v499
    %v544 = vmul.f32 %v543, %v542
    %v545 = vmul.f32 0.5, %v544
    %v546 = vsub.f32 1.5, %v545
    %v547 = vmul.f32 %v542, %v546
    %vm548 = vweird.f32 %v499
    %vm549 = vweird.f32 %v542
    %vm550 = vmor %vm548, %vm549
    %v551 = vsel %vm550, %v542, %v547
    %v552 = vrsqrt.pop %v500
    %v553 = vmul.f32 %v552, %v500
    %v554 = vmul.f32 %v553, %v552
    %v555 = vmul.f32 0.5, %v554
    %v556 = vsub.f32 1.5, %v555
    %v557 = vmul.f32 %v552, %v556
    %vm558 = vweird.f32 %v500
    %vm559 = vweird.f32 %v552
    %vm560 = vmor %vm558, %vm559
    %v561 = vsel %vm560, %v552, %v557
    %v562 = vrsqrt.pop %v501
    %v563 = vmul.f32 %v562, %v501
    %v564 = vmul.f32 %v563, %v562
    %v565 = vmul.f32 0.5, %v564
    %v566 = vsub.f32 1.5, %v565
    %v567 = vmul.f32 %v562, %v566
    %vm568 = vweird.f32 %v501
    %vm569 = vweird.f32 %v562
    %vm570 = vmor %vm568, %vm569
    %v571 = vsel %vm570, %v562, %v567
    %v572 = vrsqrt.pop %v502
    %v573 = vmul.f32 %v572, %v502
    %v574 = vmul.f32 %v573, %v572
    %v575 = vmul.f32 0.5, %v574
    %v576 = vsub.f32 1.5, %v575
    %v577 = vmul.f32 %v572, %v576
    %vm578 = vweird.f32 %v502
    %vm579 = vweird.f32 %v572
    %vm580 = vmor %vm578, %vm579
    %v581 = vsel %vm580, %v572, %v577
    %v582 = vrsqrt.pop %v503
    %v583 = vmul.f32 %v582, %v503
    %v584 = vmul.f32 %v583, %v582
    %v585 = vmul.f32 0.5, %v584
    %v586 = vsub.f32 1.5, %v585
    %v587 = vmul.f32 %v582, %v586
    %vm588 = vweird.f32 %v503
    %vm589 = vweird.f32 %v582
    %vm590 = vmor %vm588, %vm589
    %v591 = vsel %vm590, %v582, %v587
    %v592 = vrsqrt.pop %v504
    %v593 = vmul.f32 %v592, %v504
    %v594 = vmul.f32 %v593, %v592
    %v595 = vmul.f32 0.5, %v594
    %v596 = vsub.f32 1.5, %v595
    %v597 = vmul.f32 %v592, %v596
    %vm598 = vweird.f32 %v504
    %vm599 = vweird.f32 %v592
    %vm600 = vmor %vm598, %vm599
    %v601 = vsel %vm600, %v592, %v597
    %v602 = vrsqrt.pop %v505
    %v603 = vmul.f32 %v602, %v505
    %v604 = vmul.f32 %v603, %v602
    %v605 = vmul.f32 0.5, %v604
    %v606 = vsub.f32 1.5, %v605
    %v607 = vmul.f32 %v602, %v606
    %vm608 = vweird.f32 %v505
    %vm609 = vweird.f32 %v602
    %vm610 = vmor %vm608, %vm609
    %v611 = vsel %vm610, %v602, %v607
    %v612 = vrsqrt.pop %v506
    %v613 = vmul.f32 %v612, %v506
    %v614 = vmul.f32 %v613, %v612
    %v615 = vmul.f32 0.5, %v614
    %v616 = vsub.f32 1.5, %v615
    %v617 = vmul.f32 %v612, %v616
    %vm618 = vweird.f32 %v506
    %vm619 = vweird.f32 %v612
    %vm620 = vmor %vm618, %vm619
    %v621 = vsel %vm620, %v612, %v617
    %v622 = vrsqrt.pop %v507
    %v623 = vmul.f32 %v622, %v507
    %v624 = vmul.f32 %v623, %v622
    %v625 = vmul.f32 0.5, %v624
    %v626 = vsub.f32 1.5, %v625
    %v627 = vmul.f32 %v622, %v626
    %vm628 = vweird.f32 %v507
    %vm629 = vweird.f32 %v622
    %vm630 = vmor %vm628, %vm629
    %v631 = vsel %vm630, %v622, %v627
    %v632 = vrsqrt.pop %v508
    %v633 = vmul.f32 %v632, %v508
    %v634 = vmul.f32 %v633, %v632
    %v635 = vmul.f32 0.5, %v634
    %v636 = vsub.f32 1.5, %v635
    %v637 = vmul.f32 %v632, %v636
    %vm638 = vweird.f32 %v508
    %vm639 = vweird.f32 %v632
    %vm640 = vmor %vm638, %vm639
    %v641 = vsel %vm640, %v632, %v637
    %v642 = vrsqrt.pop %v509
    %v643 = vmul.f32 %v642, %v509
    %v644 = vmul.f32 %v643, %v642
    %v645 = vmul.f32 0.5, %v644
    %v646 = vsub.f32 1.5, %v645
    %v647 = vmul.f32 %v642, %v646
    %vm648 = vweird.f32 %v509
    %vm649 = vweird.f32 %v642
    %vm650 = vmor %vm648, %vm649
    %v651 = vsel %vm650, %v642, %v647
    %v652 = vrsqrt.pop %v510
    %v653 = vmul.f32 %v652, %v510
    %v654 = vmul.f32 %v653, %v652
    %v655 = vmul.f32 0.5, %v654
    %v656 = vsub.f32 1.5, %v655
    %v657 = vmul.f32 %v652, %v656
    %vm658 = vweird.f32 %v510
    %vm659 = vweird.f32 %v652
    %vm660 = vmor %vm658, %vm659
    %v661 = vsel %vm660, %v652, %v657
    %v662 = vrsqrt.pop %v511
    %v663 = vmul.f32 %v662, %v511
    %v664 = vmul.f32 %v663, %v662
    %v665 = vmul.f32 0.5, %v664
    %v666 = vsub.f32 1.5, %v665
    %v667 = vmul.f32 %v662, %v666
    %vm668 = vweird.f32 %v511
    %vm669 = vweird.f32 %v662
    %vm670 = vmor %vm668, %vm669
    %v671 = vsel %vm670, %v662, %v667
    %v672 = vmul.f32 %v400, %v521
    %v673 = vmul.f32 %v401, %v531
    %v674 = vmul.f32 %v402, %v541
    %v675 = vmul.f32 %v403, %v551
    %v676 = vmul.f32 %v404, %v561
    %v677 = vmul.f32 %v405, %v571
    %v678 = vmul.f32 %v406, %v581
    %v679 = vmul.f32 %v407, %v591
    %v680 = vmul.f32 %v408, %v601
    %v681 = vmul.f32 %v409, %v611
    %v682 = vmul.f32 %v410, %v621
    %v683 = vmul.f32 %v411, %v631
    %v684 = vmul.f32 %v412, %v641
    %v685 = vmul.f32 %v413, %v651
    %v686 = vmul.f32 %v414, %v661
    %v687 = vmul.f32 %v415, %v671
    %v688 = vld [vmem:[%s2] sm:$0x1]
    %v690 = vperm.slane %v688, 0
    %v692 = vmul.f32 %v672, %v690
    %v693 = vmul.f32 %v673, %v690
    %v694 = vmul.f32 %v674, %v690
    %v695 = vmul.f32 %v675, %v690
    %v696 = vmul.f32 %v676, %v690
    %v697 = vmul.f32 %v677, %v690
    %v698 = vmul.f32 %v678, %v690
    %v699 = vmul.f32 %v679, %v690
    %v700 = vmul.f32 %v680, %v690
    %v701 = vmul.f32 %v681, %v690
    %v702 = vmul.f32 %v682, %v690
    %v703 = vmul.f32 %v683, %v690
    %v704 = vmul.f32 %v684, %v690
    %v705 = vmul.f32 %v685, %v690
    %v706 = vmul.f32 %v686, %v690
    %v707 = vmul.f32 %v687, %v690
    %v708 = vld [vmem:[%s3] sm:$0x1]
    %v710 = vperm.slane %v708, 0
    %v712 = vadd.f32 %v692, %v710
    %v713 = vadd.f32 %v693, %v710
    %v714 = vadd.f32 %v694, %v710
    %v715 = vadd.f32 %v695, %v710
    %v716 = vadd.f32 %v696, %v710
    %v717 = vadd.f32 %v697, %v710
    %v718 = vadd.f32 %v698, %v710
    %v719 = vadd.f32 %v699, %v710
    %v720 = vadd.f32 %v700, %v710
    %v721 = vadd.f32 %v701, %v710
    %v722 = vadd.f32 %v702, %v710
    %v723 = vadd.f32 %v703, %v710
    %v724 = vadd.f32 %v704, %v710
    %v725 = vadd.f32 %v705, %v710
    %v726 = vadd.f32 %v706, %v710
    %v727 = vadd.f32 %v707, %v710
    %v728 = vpack.c.bf16 %v713, %v712
    %v729 = vpack.c.bf16 %v715, %v714
    %v730 = vpack.c.bf16 %v717, %v716
    %v731 = vpack.c.bf16 %v719, %v718
    %v732 = vpack.c.bf16 %v721, %v720
    %v733 = vpack.c.bf16 %v723, %v722
    %v734 = vpack.c.bf16 %v725, %v724
    %v735 = vpack.c.bf16 %v727, %v726
    %v736 = vld [vmem:[%s4] sm:$0xf]
    %v737 = vld [vmem:[%s4 + $0x4] sm:$0xf]
    %v738 = vld [vmem:[%s5] sm:$0x1]
    %v740 = vperm.slane %v738, 0
    %v744 = vunpack.c.l.b16 %v736
    %v745 = vunpack.c.l.b16 %v737
    %v746 = vpack.c.b16 %v745, %v744
    %v749 = vsel %vm328, %v728, 0
    %v752 = vsel %vm328, %v729, 0
    %v755 = vsel %vm328, %v730, 0
    %v758 = vsel %vm328, %v731, 0
    %v761 = vsel %vm328, %v732, 0
    %v764 = vsel %vm328, %v733, 0
    %v767 = vsel %vm328, %v734, 0
    %v770 = vsel %vm328, %v735, 0
    %772 = vmatpush.bf16.msra.mxu0 0
    %773 = vmatpush.bf16.msra.mxu0 0
    %774 = vmatpush.bf16.msra.mxu0 0
    %775 = vmatpush.bf16.msra.mxu0 0
    %776 = vmatpush.bf16.msra.mxu0 0
    %777 = vmatpush.bf16.msra.mxu0 0
    %778 = vmatpush.bf16.msra.mxu0 0
    %779 = vmatpush.bf16.msra.mxu0 %v746
    %780 = vmatmul.bf16.gmra.mxu0 %v749
    %v781 = vpop.f32.mrf.mxu0
    %v782 = vadd.f32 %v740, %v781
    %v783 = vpop.f32.mrf.mxu0
    %v784 = vadd.f32 %v740, %v783
    %785 = vmatmul.bf16.gmra.mxu0 %v752
    %v786 = vpop.f32.mrf.mxu0
    %v787 = vadd.f32 %v740, %v786
    %v788 = vpop.f32.mrf.mxu0
    %v789 = vadd.f32 %v740, %v788
    %790 = vmatmul.bf16.gmra.mxu0 %v755
    %v791 = vpop.f32.mrf.mxu0
    %v792 = vadd.f32 %v740, %v791
    %v793 = vpop.f32.mrf.mxu0
    %v794 = vadd.f32 %v740, %v793
    %795 = vmatmul.bf16.gmra.mxu0 %v758
    %v796 = vpop.f32.mrf.mxu0
    %v797 = vadd.f32 %v740, %v796
    %v798 = vpop.f32.mrf.mxu0
    %v799 = vadd.f32 %v740, %v798
    %800 = vmatmul.bf16.gmra.mxu0 %v761
    %v801 = vpop.f32.mrf.mxu0
    %v802 = vadd.f32 %v740, %v801
    %v803 = vpop.f32.mrf.mxu0
    %v804 = vadd.f32 %v740, %v803
    %805 = vmatmul.bf16.gmra.mxu0 %v764
    %v806 = vpop.f32.mrf.mxu0
    %v807 = vadd.f32 %v740, %v806
    %v808 = vpop.f32.mrf.mxu0
    %v809 = vadd.f32 %v740, %v808
    %810 = vmatmul.bf16.gmra.mxu0 %v767
    %v811 = vpop.f32.mrf.mxu0
    %v812 = vadd.f32 %v740, %v811
    %v813 = vpop.f32.mrf.mxu0
    %v814 = vadd.f32 %v740, %v813
    %815 = vmatmul.bf16.gmra.mxu0 %v770
    %v816 = vpop.f32.mrf.mxu0
    %v817 = vadd.f32 %v740, %v816
    %v818 = vpop.f32.mrf.mxu0
    %v819 = vadd.f32 %v740, %v818
    %820 = vdwg.mxu0
    %821 = vst.msk [vmem:[%s6] sm:$0xff] %vm311, %v782
    %822 = vst.msk [vmem:[%s6 + $0x8] sm:$0xff] %vm311, %v784
    %823 = vst.msk [vmem:[%s6 + $0x10] sm:$0xff] %vm311, %v787
    %824 = vst.msk [vmem:[%s6 + $0x18] sm:$0xff] %vm311, %v789
    %825 = vst.msk [vmem:[%s6 + $0x20] sm:$0xff] %vm311, %v792
    %826 = vst.msk [vmem:[%s6 + $0x28] sm:$0xff] %vm311, %v794
    %827 = vst.msk [vmem:[%s6 + $0x30] sm:$0xff] %vm311, %v797
    %828 = vst.msk [vmem:[%s6 + $0x38] sm:$0xff] %vm311, %v799
    %829 = vst.msk [vmem:[%s6 + $0x40] sm:$0xff] %vm311, %v802
    %830 = vst.msk [vmem:[%s6 + $0x48] sm:$0xff] %vm311, %v804
    %831 = vst.msk [vmem:[%s6 + $0x50] sm:$0xff] %vm311, %v807
    %832 = vst.msk [vmem:[%s6 + $0x58] sm:$0xff] %vm311, %v809
    %833 = vst.msk [vmem:[%s6 + $0x60] sm:$0xff] %vm311, %v812
    %834 = vst.msk [vmem:[%s6 + $0x68] sm:$0xff] %vm311, %v814
    %835 = vst.msk [vmem:[%s6 + $0x70] sm:$0xff] %vm311, %v817
    %836 = vst.msk [vmem:[%s6 + $0x78] sm:$0xff] %vm311, %v819
    // Predicated region
    $region102: #{patch_merging.1} parent=1 // pred_check
      _
    $region103: #{patch_merging.1} parent=1 // pred_check_branch
      %838 = sbr.rel (0) target = $region105
    $region104: #{patch_merging.1} parent=1 // pred_region
      _
    $region105: #{patch_merging.1} parent=1 // pred_fallthru
      _
    // Predicated region
    $region106: #{patch_merging.1} parent=1 // pred_check
      _
    $region107: #{patch_merging.1} parent=1 // pred_check_branch
      %840 = sbr.rel (0) target = $region109
    $region108: #{patch_merging.1} parent=1 // pred_region
      _
    $region109: #{patch_merging.1} parent=1 // pred_fallthru
      _

</llo_original>
